<compile_context>
chip_gen: v7x
topology: tpu7x:2x2x1
jax: 0.10.0
libtpu: 0.0.40
codegen_flags: <defaults>
</compile_context>

<pallas_src>
import functools

import jax
import jax.numpy as jnp
from jax.experimental import pallas as pl
from jax.experimental.pallas import tpu as pltpu


_SQRT_2_OVER_PI = 0.7978845608028654


def _gelu_new(x):
    # HuggingFace "gelu_new": 0.5*x*(1+tanh(sqrt(2/pi)*(x+0.044715*x^3)))
    return 0.5 * x * (1.0 + jnp.tanh(_SQRT_2_OVER_PI * (x + 0.044715 * (x * x * x))))


def _round_up(x, m):
    return (x + m - 1) // m * m


def _cdiv(a, b):
    return (a + b - 1) // b


@functools.lru_cache(maxsize=1)
def _tpu_generation():
    """Return (vmem_headroom_bytes, num_tensorcores) for the local TPU."""
    try:
        kind = jax.devices()[0].device_kind.lower()
    except Exception:  # pragma: no cover - defensive
        kind = ""
    if "v7" in kind:
        # v7x: 64 MiB VMEM per TensorCore, 2 TCs/chip -> leave compiler headroom.
        return 56 * 1024 * 1024, 2
    if any(g in kind for g in ("v6", "v5", "v4")):
        # 128 MiB VMEM, single TensorCore.
        return 100 * 1024 * 1024, 1
    # Unknown backend: be conservative.
    return 48 * 1024 * 1024, 1


# --------------------------------------------------------------------------
# Kernels
# --------------------------------------------------------------------------
def _mlp_kernel_resident(x_ref, w_in_ref, b_in_ref, w_out_ref, b_out_ref, o_ref):
    """Weights fully resident in VMEM; grid = (token tiles,)."""
    h = jnp.dot(x_ref[...], w_in_ref[...], preferred_element_type=jnp.float32)
    h = _gelu_new(h + b_in_ref[...])
    y = jnp.dot(h.astype(jnp.bfloat16), w_out_ref[...],
                preferred_element_type=jnp.float32)
    # TODO(synk): training-mode dropout (resid_pdrop) would use pltpu.prng_*
    # here; eval-mode dropout is the identity.
    o_ref[...] = (y + b_out_ref[...]).astype(o_ref.dtype)


def _mlp_kernel_tiled_acc(x_ref, w_in_ref, b_in_ref, w_out_ref, b_out_ref,
                          o_ref, acc_ref):
    """Tiled intermediate dim, f32 VMEM accumulator (non-f32 output dtype)."""
    k = pl.program_id(1)

    @pl.when(k == 0)
    def _():
        acc_ref[...] = jnp.zeros_like(acc_ref)

    h = jnp.dot(x_ref[...], w_in_ref[...], preferred_element_type=jnp.float32)
    h = _gelu_new(h + b_in_ref[...])          # exact: gelu_new is elementwise
    acc_ref[...] += jnp.dot(h.astype(jnp.bfloat16), w_out_ref[...],
                            preferred_element_type=jnp.float32)

    @pl.when(k == pl.num_programs(1) - 1)
    def _():
        o_ref[...] = (acc_ref[...] + b_out_ref[...]).astype(o_ref.dtype)


def _mlp_kernel_tiled_f32out(x_ref, w_in_ref, b_in_ref, w_out_ref, b_out_ref,
                             o_ref):
    """Tiled intermediate dim, f32 output: accumulate directly into the
    k-invariant (resident) output block -> no separate scratch."""
    k = pl.program_id(1)

    @pl.when(k == 0)
    def _():
        o_ref[...] = jnp.broadcast_to(b_out_ref[...], o_ref.shape)

    h = jnp.dot(x_ref[...], w_in_ref[...], preferred_element_type=jnp.float32)
    h = _gelu_new(h + b_in_ref[...])
    o_ref[...] += jnp.dot(h.astype(jnp.bfloat16), w_out_ref[...],
                          preferred_element_type=jnp.float32)


# --------------------------------------------------------------------------
# Tiling helpers
# --------------------------------------------------------------------------
def _pick_ti(I, ti_request):
    """Largest multiple of 256 (then 128) <= request that divides I; else pad I."""
    ti_target = max(256, min(int(ti_request), max(I, 1)))
    t = (min(ti_target, I) // 256) * 256
    while t >= 256:
        if I % t == 0:
            return t, I
        t -= 256
    t = (min(ti_target, I) // 128) * 128
    while t >= 128:
        if I % t == 0:
            return t, I
        t -= 128
    # No good divisor: zero-pad I (exact -- padded W_out rows contribute 0).
    return 256, _round_up(I, 256)


# --------------------------------------------------------------------------
# Wrapper
# --------------------------------------------------------------------------
@functools.partial(jax.jit, static_argnames=("tm", "ti", "force_tiled"))
def progen_mlp(hidden_states, w_in, b_in, w_out, b_out, *,
               tm=1024, ti=512, force_tiled=False):
    """hidden_states: [B,S,E]; w_in: [E,I]; b_in: [I]; w_out: [I,E]; b_out: [E].

    Weights are stored pre-transposed ([in_features, out_features]) and should
    be passed already cast to bf16 (the astype below is then a no-op).
    """
    B, S, E = hidden_states.shape
    E2, I = w_in.shape
    assert E2 == E and w_out.shape == (I, E)
    assert b_in.shape == (I,) and b_out.shape == (E,)

    vmem_headroom, num_tc = _tpu_generation()

    T = B * S
    out_dtype = hidden_states.dtype
    out_bytes = jnp.dtype(out_dtype).itemsize
    f32_out = jnp.dtype(out_dtype) == jnp.dtype(jnp.float32)

    # ---- choose execution path & tiles -----------------------------------
    weight_bytes = 2 * E * I * 2  # W_in + W_out in bf16
    use_resident = (not force_tiled) and weight_bytes <= vmem_headroom // 3

    # Token tile: multiple of 8, clamped to the (rounded) token count to avoid
    # wasteful padding for small T.
    tm = max(8, (int(tm) // 8) * 8)
    tm = min(tm, _round_up(T, 8))
    # Megacore balance (v7x): make sure each TensorCore gets >= 1 token tile.
    if num_tc >= 2 and T > 8:
        while tm > 8 and _cdiv(T, tm) < num_tc:
            tm = max(8, _round_up((tm + 1) // 2, 8))

    if use_resident:
        def _est_resident(tm_):
            return (2 * weight_bytes                 # weights (assume 2 buffers)
                    + 2 * tm_ * E * 2                # x tile (bf16, 2 buffers)
                    + 2 * tm_ * E * out_bytes        # output tile (2 buffers)
                    + 2 * (I + E) * 4)               # biases
        while tm > 256 and _est_resident(tm) > vmem_headroom:
            tm = max(256, _round_up((tm + 1) // 2, 8))
        use_resident = _est_resident(tm) <= vmem_headroom

    if use_resident:
        ti_eff, I_pad = I, I
    else:
        ti_eff, I_pad = _pick_ti(I, ti)

        def _est_tiled(tm_, ti_):
            acc = 0 if f32_out else tm_ * E * 4
            return (2 * tm_ * E * 2                  # x tile
                    + 2 * (2 * E * ti_ * 2)          # W_in + W_out blocks
                    + 2 * (ti_ + E) * 4              # biases
                    + 2 * tm_ * E * out_bytes        # output tile
                    + acc)                           # f32 accumulator
        while tm > 256 and _est_tiled(tm, ti_eff) > vmem_headroom:
            tm = max(256, _round_up((tm + 1) // 2, 8))
        while (ti_eff > 256 and I_pad % (ti_eff // 2) == 0
               and _est_tiled(tm, ti_eff) > vmem_headroom):
            ti_eff //= 2

    T_pad = _round_up(T, tm)
    n_tok = T_pad // tm

    # ---- operand preparation ----------------------------------------------
    x2d = hidden_states.reshape(T, E).astype(jnp.bfloat16)
    if T_pad != T:
        x2d = jnp.pad(x2d, ((0, T_pad - T), (0, 0)))

    w_in_bf = w_in.astype(jnp.bfloat16)      # no-op if caller passed bf16
    w_out_bf = w_out.astype(jnp.bfloat16)
    b_in2 = b_in.reshape(1, I).astype(jnp.float32)
    b_out2 = b_out.reshape(1, E).astype(jnp.float32)
    if I_pad != I:
        w_in_bf = jnp.pad(w_in_bf, ((0, 0), (0, I_pad - I)))
        w_out_bf = jnp.pad(w_out_bf, ((0, I_pad - I), (0, 0)))
        b_in2 = jnp.pad(b_in2, ((0, 0), (0, I_pad - I)))

    # ---- grid / specs ------------------------------------------------------
    if use_resident:
        grid = (n_tok,)
        in_specs = [
            pl.BlockSpec((tm, E), lambda i: (i, 0)),        # x token tile
            pl.BlockSpec((E, I_pad), lambda i: (0, 0)),     # W_in (resident)
            pl.BlockSpec((1, I_pad), lambda i: (0, 0)),     # b_in (resident)
            pl.BlockSpec((I_pad, E), lambda i: (0, 0)),     # W_out (resident)
            pl.BlockSpec((1, E), lambda i: (0, 0)),         # b_out (resident)
        ]
        out_specs = pl.BlockSpec((tm, E), lambda i: (i, 0))
        scratch_shapes = []
        kernel = _mlp_kernel_resident
        dim_sem = ("parallel",)
        vmem_est = (2 * weight_bytes + 2 * tm * E * 2
                    + 2 * tm * E * out_bytes + 2 * (I_pad + E) * 4)
        bytes_accessed = (T_pad * E * 2 + 2 * E * I_pad * 2
                          + (I_pad + E) * 4 + T_pad * E * out_bytes)
    else:
        grid = (n_tok, I_pad // ti_eff)
        in_specs = [
            pl.BlockSpec((tm, E), lambda i, k: (i, 0)),     # x token tile
            pl.BlockSpec((E, ti_eff), lambda i, k: (0, k)), # W_in column block
            pl.BlockSpec((1, ti_eff), lambda i, k: (0, k)), # b_in block
            pl.BlockSpec((ti_eff, E), lambda i, k: (k, 0)), # W_out row block
            pl.BlockSpec((1, E), lambda i, k: (0, 0)),      # b_out (invariant)
        ]
        out_specs = pl.BlockSpec((tm, E), lambda i, k: (i, 0))
        if f32_out:
            kernel = _mlp_kernel_tiled_f32out
            scratch_shapes = []
            acc_bytes = 0
        else:
            kernel = _mlp_kernel_tiled_acc
            scratch_shapes = [pltpu.VMEM((tm, E), jnp.float32)]
            acc_bytes = tm * E * 4
        dim_sem = ("parallel", "arbitrary")
        vmem_est = (2 * tm * E * 2 + 2 * (2 * E * ti_eff * 2)
                    + 2 * (ti_eff + E) * 4 + 2 * tm * E * out_bytes + acc_bytes)
        # Weights (and b_in) are re-streamed once per token tile.
        bytes_accessed = (T_pad * E * 2
                          + n_tok * (2 * E * I_pad * 2 + I_pad * 4)
                          + E * 4 + T_pad * E * out_bytes)

    vmem_limit = int(min(vmem_headroom,
                         max(int(1.25 * vmem_est), 16 * 1024 * 1024)))

    cost = pl.CostEstimate(
        flops=4 * T_pad * E * I_pad,            # two matmuls
        transcendentals=T_pad * I_pad,          # tanh in gelu_new
        bytes_accessed=int(bytes_accessed),
    )

    out = pl.pallas_call(
        kernel,
        out_shape=jax.ShapeDtypeStruct((T_pad, E), out_dtype),
        grid_spec=pltpu.PrefetchScalarGridSpec(
            num_scalar_prefetch=0,
            grid=grid,
            in_specs=in_specs,
            out_specs=out_specs,
            scratch_shapes=scratch_shapes,
        ),
        compiler_params=pltpu.CompilerParams(
            dimension_semantics=dim_sem,
            vmem_limit_bytes=vmem_limit,
        ),
        cost_estimate=cost,
    )(x2d, w_in_bf, b_in2, w_out_bf, b_out2)

    return out[:T].reshape(B, S, E)


def progen_mlp_reference(hidden_states, w_in, b_in, w_out, b_out):
    """Reference with the same bf16-operand / f32-accumulate numerics."""
    B, S, E = hidden_states.shape
    x = hidden_states.reshape(B * S, E).astype(jnp.bfloat16)
    h = jnp.dot(x, w_in.astype(jnp.bfloat16),
                preferred_element_type=jnp.float32) + b_in.astype(jnp.float32)
    h = _gelu_new(h)
    y = jnp.dot(h.astype(jnp.bfloat16), w_out.astype(jnp.bfloat16),
                preferred_element_type=jnp.float32) + b_out.astype(jnp.float32)
    return y.reshape(B, S, E).astype(hidden_states.dtype)


if __name__ == "__main__":
    # --- Test 1: small ProGen-like config, resident-weights path ------------
    batch, seq, embed_dim = 2, 8, 32
    intermediate_size = 4 * embed_dim

    key = jax.random.PRNGKey(0)
    kx, k1, k2, k3, k4 = jax.random.split(key, 5)

    hidden_states = jax.random.normal(kx, (batch, seq, embed_dim), jnp.float32)
    w_in = jax.random.normal(k1, (embed_dim, intermediate_size), jnp.float32) * 0.02
    b_in = jax.random.normal(k2, (intermediate_size,), jnp.float32) * 0.02
    w_out = jax.random.normal(k3, (intermediate_size, embed_dim), jnp.float32) * 0.02
    b_out = jax.random.normal(k4, (embed_dim,), jnp.float32) * 0.02

    # Cast weights to bf16 ONCE (cached copies) -- no per-call recast.
    w_in_bf, w_out_bf = w_in.astype(jnp.bfloat16), w_out.astype(jnp.bfloat16)

    out = progen_mlp(hidden_states, w_in_bf, b_in, w_out_bf, b_out)
    out = jax.block_until_ready(out)
    ref = progen_mlp_reference(hidden_states, w_in, b_in, w_out, b_out)
    assert out.shape == (batch, seq, embed_dim)
    assert jnp.allclose(out, ref, atol=2e-3, rtol=2e-2), "mismatch (resident)"

    # --- Test 2: forced tiled path, f32 output (accumulate into o_ref),
    #     non-multiple token count -> padding + megacore clamp exercised ----
    b2, s2, e2 = 2, 136, 128
    i2 = 4 * e2  # 512 -> ti=256 gives a 2-step intermediate-dim accumulation
    kx, k1, k2, k3, k4 = jax.random.split(jax.random.PRNGKey(1), 5)
    hs2 = jax.random.normal(kx, (b2, s2, e2), jnp.float32)
    w1 = jax.random.normal(k1, (e2, i2), jnp.float32) * 0.02
    bb1 = jax.random.normal(k2, (i2,), jnp.float32) * 0.02
    w2 = jax.random.normal(k3, (i2, e2), jnp.float32) * 0.02
    bb2 = jax.random.normal(k4, (e2,), jnp.float32) * 0.02
    w1_bf, w2_bf = w1.astype(jnp.bfloat16), w2.astype(jnp.bfloat16)

    out2 = progen_mlp(hs2, w1_bf, bb1, w2_bf, bb2, ti=256, force_tiled=True)
    out2 = jax.block_until_ready(out2)
    ref2 = progen_mlp_reference(hs2, w1, bb1, w2, bb2)
    assert out2.shape == (b2, s2, e2)
    assert jnp.allclose(out2, ref2, atol=2e-3, rtol=2e-2), "mismatch (tiled f32)"

    # --- Test 3: forced tiled path, bf16 activations -> f32 scratch kernel --
    hs3 = hs2.astype(jnp.bfloat16)
    out3 = progen_mlp(hs3, w1_bf, bb1, w2_bf, bb2, ti=256, force_tiled=True)
    out3 = jax.block_until_ready(out3)
    ref3 = progen_mlp_reference(hs3, w1, bb1, w2, bb2)
    assert out3.dtype == jnp.bfloat16
    assert jnp.allclose(out3.astype(jnp.float32), ref3.astype(jnp.float32),
                        atol=2e-2, rtol=5e-2), "mismatch (tiled bf16)"

    print("KERNEL_OK")
</pallas_src>

<mosaic_0001>
module attributes {stable_mosaic.version = 11 : i64} {
  func.func @_mlp_kernel_resident(%arg0: i32, %arg1: memref<16x32xbf16, #tpu.memory_space<vmem>>, %arg2: memref<32x128xbf16, #tpu.memory_space<vmem>>, %arg3: memref<1x128xf32, #tpu.memory_space<vmem>>, %arg4: memref<128x32xbf16, #tpu.memory_space<vmem>>, %arg5: memref<1x32xf32, #tpu.memory_space<vmem>>, %arg6: memref<16x32xf32, #tpu.memory_space<vmem>>) attributes {dimension_semantics = [#tpu.dimension_semantics<parallel>], iteration_bounds = array<i64: 1>, scalar_prefetch = 0 : i64, scratch_operands = 0 : i64, tpu.core_type = #tpu.core_type<tc>, window_params = [{transform_indices = @transform_0, window_bounds = array<i64: 16, 32>}, {pipeline_mode = #tpu.pipeline_mode<synchronous>, transform_indices = @transform_1, window_bounds = array<i64: 32, 128>}, {pipeline_mode = #tpu.pipeline_mode<synchronous>, transform_indices = @transform_2, window_bounds = array<i64: 1, 128>}, {pipeline_mode = #tpu.pipeline_mode<synchronous>, transform_indices = @transform_3, window_bounds = array<i64: 128, 32>}, {pipeline_mode = #tpu.pipeline_mode<synchronous>, transform_indices = @transform_4, window_bounds = array<i64: 1, 32>}, {transform_indices = @transform_5, window_bounds = array<i64: 16, 32>}]} {
    %c0 = arith.constant 0 : index
    %c0_0 = arith.constant 0 : index
    %0 = vector.load %arg1[%c0, %c0_0] : memref<16x32xbf16, #tpu.memory_space<vmem>>, vector<16x32xbf16>
    %c0_1 = arith.constant 0 : index
    %c0_2 = arith.constant 0 : index
    %1 = vector.load %arg2[%c0_1, %c0_2] : memref<32x128xbf16, #tpu.memory_space<vmem>>, vector<32x128xbf16>
    %cst = arith.constant dense<0.000000e+00> : vector<16x128xf32>
    %2 = tpu.matmul %0, %1, %cst {dimension_numbers = #tpu.dot_dimension_numbers<[1], [0], [0], [1], [0, 0, 1, 1], [], []>} : vector<16x32xbf16>, vector<32x128xbf16>, vector<16x128xf32> -> vector<16x128xf32>
    %c0_3 = arith.constant 0 : index
    %c0_4 = arith.constant 0 : index
    %3 = vector.load %arg3[%c0_3, %c0_4] : memref<1x128xf32, #tpu.memory_space<vmem>>, vector<1x128xf32>
    %4 = vector.broadcast %3 : vector<1x128xf32> to vector<16x128xf32>
    %5 = arith.addf %2, %4 : vector<16x128xf32>
    %cst_5 = arith.constant 5.000000e-01 : f32
    %6 = vector.broadcast %cst_5 : f32 to vector<16x128xf32>
    %7 = arith.mulf %6, %5 : vector<16x128xf32>
    %8 = arith.mulf %5, %5 : vector<16x128xf32>
    %9 = arith.mulf %8, %5 : vector<16x128xf32>
    %cst_6 = arith.constant 4.471500e-02 : f32
    %10 = vector.broadcast %cst_6 : f32 to vector<16x128xf32>
    %11 = arith.mulf %10, %9 : vector<16x128xf32>
    %12 = arith.addf %5, %11 : vector<16x128xf32>
    %cst_7 = arith.constant 0.797884583 : f32
    %13 = vector.broadcast %cst_7 : f32 to vector<16x128xf32>
    %14 = arith.mulf %13, %12 : vector<16x128xf32>
    %15 = math.tanh %14 : vector<16x128xf32>
    %cst_8 = arith.constant 1.000000e+00 : f32
    %16 = vector.broadcast %cst_8 : f32 to vector<16x128xf32>
    %17 = arith.addf %16, %15 : vector<16x128xf32>
    %18 = arith.mulf %7, %17 : vector<16x128xf32>
    %19 = arith.truncf %18 : vector<16x128xf32> to vector<16x128xbf16>
    %c0_9 = arith.constant 0 : index
    %c0_10 = arith.constant 0 : index
    %20 = vector.load %arg4[%c0_9, %c0_10] : memref<128x32xbf16, #tpu.memory_space<vmem>>, vector<128x32xbf16>
    %cst_11 = arith.constant dense<0.000000e+00> : vector<16x32xf32>
    %21 = tpu.matmul %19, %20, %cst_11 {dimension_numbers = #tpu.dot_dimension_numbers<[1], [0], [0], [1], [0, 0, 1, 1], [], []>} : vector<16x128xbf16>, vector<128x32xbf16>, vector<16x32xf32> -> vector<16x32xf32>
    %c0_12 = arith.constant 0 : index
    %c0_13 = arith.constant 0 : index
    %22 = vector.load %arg5[%c0_12, %c0_13] : memref<1x32xf32, #tpu.memory_space<vmem>>, vector<1x32xf32>
    %23 = vector.broadcast %22 : vector<1x32xf32> to vector<16x32xf32>
    %24 = arith.addf %21, %23 : vector<16x32xf32>
    %c0_14 = arith.constant 0 : index
    %c0_15 = arith.constant 0 : index
    %25 = vector.load %arg6[%c0_14, %c0_15] : memref<16x32xf32, #tpu.memory_space<vmem>>, vector<16x32xf32>
    tpu.vector_store %arg6[%c0_14, %c0_15], %24 {strides = array<i32>} : memref<16x32xf32, #tpu.memory_space<vmem>>, vector<16x32xf32>,
    return
  }
  func.func @transform_0(%arg0: i32) -> (i32, i32) {
    %c0_i32 = arith.constant 0 : i32
    %c0_i32_0 = arith.constant 0 : i32
    return %arg0, %c0_i32 : i32, i32
  }
  func.func @transform_1(%arg0: i32) -> (i32, i32) {
    %c0_i32 = arith.constant 0 : i32
    %c0_i32_0 = arith.constant 0 : i32
    %c0_i32_1 = arith.constant 0 : i32
    return %c0_i32, %c0_i32_0 : i32, i32
  }
  func.func @transform_2(%arg0: i32) -> (i32, i32) {
    %c0_i32 = arith.constant 0 : i32
    %c0_i32_0 = arith.constant 0 : i32
    %c0_i32_1 = arith.constant 0 : i32
    return %c0_i32, %c0_i32_0 : i32, i32
  }
  func.func @transform_3(%arg0: i32) -> (i32, i32) {
    %c0_i32 = arith.constant 0 : i32
    %c0_i32_0 = arith.constant 0 : i32
    %c0_i32_1 = arith.constant 0 : i32
    return %c0_i32, %c0_i32_0 : i32, i32
  }
  func.func @transform_4(%arg0: i32) -> (i32, i32) {
    %c0_i32 = arith.constant 0 : i32
    %c0_i32_0 = arith.constant 0 : i32
    %c0_i32_1 = arith.constant 0 : i32
    return %c0_i32, %c0_i32_0 : i32, i32
  }
  func.func @transform_5(%arg0: i32) -> (i32, i32) {
    %c0_i32 = arith.constant 0 : i32
    %c0_i32_0 = arith.constant 0 : i32
    return %arg0, %c0_i32 : i32, i32
  }
}

</mosaic_0001>

<llo_original>
// kernel: progen_mlp.1
$region0: #{progen_mlp.1}
  #allocation0 [shape = 'u32[]', space=smem, size = 0x4, offset = 0x4, fixed_abs, tag = 'smem constant byte address 0x4 - core index']
  #allocation1 [shape = 'u32[144,128]{1,0:T(1,128)}', space=vmem, size = 0x12000, scoped, tag = 'internal scratch']
  %s0 = inlined_call_operand.vmem [shape: bf16[16,32], index: 0, kind: input, shape index: {}]
  %s1 = inlined_call_operand.vmem [shape: bf16[32,128], index: 1, kind: input, shape index: {}]
  %s2 = inlined_call_operand.vmem [shape: f32[1,128], index: 2, kind: input, shape index: {}]
  %s3 = inlined_call_operand.vmem [shape: bf16[128,32], index: 3, kind: input, shape index: {}]
  %s4 = inlined_call_operand.vmem [shape: f32[1,32], index: 4, kind: input, shape index: {}]
  %s5 = inlined_call_operand.hbm [shape: f32[16,32], index: 5, kind: output, shape index: {}]
  %s6 = sld [smem:[#allocation0]]
  $region30: #{progen_mlp.1} parent=0
    _
  %s8 = ssub.s32 1, %s6
  %s9 = scalar_select 0, %s8, %s6
  $region1: #{progen_mlp.1} parent=0
    #allocation2 [shape = 'u8[8192]{0}', space=vmem, size = 0x2000, scoped, tag = 'output window, operand 0, single buffered']
    #allocation3 [shape = 's32[1]{0}', space=sflag, size = 0x4, scoped, tag = 'scoped memory for progen_mlp.1']
    %10 = vsyncpa [#allocation3], 0
    // Predicated region
    $region2: #{progen_mlp.1} parent=1 // pred_check
      _
    $region3: #{progen_mlp.1} parent=1 // pred_check_branch
      %12 = sbr.rel (0) target = $region5
    $region4: #{progen_mlp.1} parent=1 // pred_region
      _
    $region5: #{progen_mlp.1} parent=1 // pred_fallthru
      _
    // Predicated region
    $region6: #{progen_mlp.1} parent=1 // pred_check
      _
    $region7: #{progen_mlp.1} parent=1 // pred_check_branch
      %14 = sbr.rel (0) target = $region9
    $region8: #{progen_mlp.1} parent=1 // pred_region
      _
    $region9: #{progen_mlp.1} parent=1 // pred_fallthru
      _
    // Predicated region
    $region10: #{progen_mlp.1} parent=1 // pred_check
      _
    $region11: #{progen_mlp.1} parent=1 // pred_check_branch
      %16 = sbr.rel (0) target = $region13
    $region12: #{progen_mlp.1} parent=1 // pred_region
      _
    $region13: #{progen_mlp.1} parent=1 // pred_fallthru
      _
    // Predicated region
    $region14: #{progen_mlp.1} parent=1 // pred_check
      _
    $region15: #{progen_mlp.1} parent=1 // pred_check_branch
      %18 = sbr.rel (0) target = $region17
    $region16: #{progen_mlp.1} parent=1 // pred_region
      _
    $region17: #{progen_mlp.1} parent=1 // pred_fallthru
      _
    // Predicated region
    $region18: #{progen_mlp.1} parent=1 // pred_check
      _
    $region19: #{progen_mlp.1} parent=1 // pred_check_branch
      %20 = sbr.rel (0) target = $region21
    $region20: #{progen_mlp.1} parent=1 // pred_region
      _
    $region21: #{progen_mlp.1} parent=1 // pred_fallthru
      _
    %v22 = vld [vmem:[%s0] sm:$0xf]
    %v23 = vld [vmem:[%s0 + $0x4] sm:$0xf]
    %v24 = vld [vmem:[%s1] sm:$0xf]
    %v25 = vld [vmem:[%s1 + $0x4] sm:$0xf]
    %v26 = vld [vmem:[%s1 + $0x8] sm:$0xf]
    %v27 = vld [vmem:[%s1 + $0xc] sm:$0xf]
    %v28 = vld [vmem:[%s2] sm:$0x1]
    %v30 = vlaneseq
    %v31 = vshrl.u32 %v30, 7
    %v32 = vsub.s32 0, %v31
    %v33 = vrot.slane %v28, %v32
    %v37 = vunpack.c.l.b16 %v22
    %v38 = vunpack.c.l.b16 %v23
    %v39 = vpack.c.b16 %v38, %v37
    %v44 = vunpack.c.l.b16 %v24
    %v45 = vunpack.c.l.b16 %v25
    %v46 = vunpack.c.l.b16 %v26
    %v47 = vunpack.c.l.b16 %v27
    %v48 = vpack.c.b16 %v45, %v44
    %v49 = vpack.c.b16 %v47, %v46
    %vm52 = vcmask 261120
    %v54 = vsel %vm52, %v39, 0
    %56 = vmatprep.subr.bf16.mxu0 0
    %57 = vmatpush1.bf16.msra.mxu0 %v48
    %58 = vmatprep.subr.bf16.mxu0 0
    %59 = vmatpush1.bf16.msra.mxu0 %v49
    %60 = vmatprep.subr.bf16.mxu0 0
    %61 = vmatpush1.bf16.msra.mxu0 0
    %62 = vmatprep.subr.bf16.mxu0 0
    %63 = vmatpush1.bf16.msra.mxu0 0
    %64 = vmatprep.subr.bf16.mxu0 0
    %65 = vmatpush1.bf16.msra.mxu0 0
    %66 = vmatprep.subr.bf16.mxu0 0
    %67 = vmatpush1.bf16.msra.mxu0 0
    %68 = vmatprep.subr.bf16.mxu0 0
    %69 = vmatpush1.bf16.msra.mxu0 0
    %70 = vmatprep.subr.bf16.mxu0 0
    %71 = vmatpush1.bf16.msra.mxu0 0
    %72 = vmatprep.subr.bf16.mxu0 0
    %73 = vmatpush1.bf16.msra.mxu0 0
    %74 = vmatprep.subr.bf16.mxu0 0
    %75 = vmatpush1.bf16.msra.mxu0 0
    %76 = vmatprep.subr.bf16.mxu0 0
    %77 = vmatpush1.bf16.msra.mxu0 0
    %78 = vmatprep.subr.bf16.mxu0 0
    %79 = vmatpush1.bf16.msra.mxu0 0
    %80 = vmatprep.subr.bf16.mxu0 0
    %81 = vmatpush1.bf16.msra.mxu0 0
    %82 = vmatprep.subr.bf16.mxu0 0
    %83 = vmatpush1.bf16.msra.mxu0 0
    %84 = vmatprep.subr.bf16.mxu0 0
    %85 = vmatpush1.bf16.msra.mxu0 0
    %86 = vmatprep.subr.bf16.mxu0 0
    %87 = vmatpush1.bf16.msra.mxu0 0
    %88 = vmatprep.mubr.bf16.mxu0 0
    %89 = vmatmul.mubr.bf16.gmra.mrb[0].mxu0 %v54
    %v90 = vpop.f32.mrb[0].mxu0
    %v91 = vadd.f32 %v33, %v90
    %v92 = vpop.f32.mrb[0].mxu0
    %v93 = vpop.f32.mrb[0].mxu0
    %v94 = vadd.f32 %v33, %v93
    %v95 = vpop.f32.mrb[0].mxu0
    %96 = vdwg.mxu0
    %v97 = vmul.f32 %v91, 0.5
    %v98 = vmul.f32 %v94, 0.5
    %v99 = vmul.f32 %v91, %v91
    %v100 = vmul.f32 %v94, %v94
    %v101 = vmul.f32 %v99, %v91
    %v102 = vmul.f32 %v100, %v94
    %v103 = vmul.f32 %v101, 0.044715
    %v104 = vmul.f32 %v102, 0.044715
    %v105 = vadd.f32 %v91, %v103
    %v106 = vadd.f32 %v94, %v104
    %v107 = vmul.f32 %v105, 0.7978846
    %v108 = vmul.f32 %v106, 0.7978846
    %v109 = vtanh.pop %v107
    %v110 = vtanh.pop %v108
    %v111 = vadd.f32 %v109, 1.0
    %v112 = vadd.f32 %v110, 1.0
    %v113 = vmul.f32 %v97, %v111
    %v114 = vmul.f32 %v98, %v112
    %v115 = vpack.c.bf16 %v114, %v113
    %v116 = vld [vmem:[%s3] sm:$0xf]
    %v117 = vld [vmem:[%s3 + $0x4] sm:$0xf]
    %v118 = vld [vmem:[%s3 + $0x8] sm:$0xf]
    %v119 = vld [vmem:[%s3 + $0xc] sm:$0xf]
    %v120 = vld [vmem:[%s3 + $0x10] sm:$0xf]
    %v121 = vld [vmem:[%s3 + $0x14] sm:$0xf]
    %v122 = vld [vmem:[%s3 + $0x18] sm:$0xf]
    %v123 = vld [vmem:[%s3 + $0x1c] sm:$0xf]
    %v124 = vld [vmem:[%s3 + $0x20] sm:$0xf]
    %v125 = vld [vmem:[%s3 + $0x24] sm:$0xf]
    %v126 = vld [vmem:[%s3 + $0x28] sm:$0xf]
    %v127 = vld [vmem:[%s3 + $0x2c] sm:$0xf]
    %v128 = vld [vmem:[%s3 + $0x30] sm:$0xf]
    %v129 = vld [vmem:[%s3 + $0x34] sm:$0xf]
    %v130 = vld [vmem:[%s3 + $0x38] sm:$0xf]
    %v131 = vld [vmem:[%s3 + $0x3c] sm:$0xf]
    %v132 = vld [vmem:[%s4] sm:$0x1]
    %v134 = vlaneseq
    %v135 = vshrl.u32 %v134, 7
    %v136 = vsub.s32 0, %v135
    %v137 = vrot.slane %v132, %v136
    %v155 = vunpack.c.l.b16 %v116
    %v156 = vunpack.c.l.b16 %v117
    %v157 = vunpack.c.l.b16 %v118
    %v158 = vunpack.c.l.b16 %v119
    %v159 = vunpack.c.l.b16 %v120
    %v160 = vunpack.c.l.b16 %v121
    %v161 = vunpack.c.l.b16 %v122
    %v162 = vunpack.c.l.b16 %v123
    %v163 = vunpack.c.l.b16 %v124
    %v164 = vunpack.c.l.b16 %v125
    %v165 = vunpack.c.l.b16 %v126
    %v166 = vunpack.c.l.b16 %v127
    %v167 = vunpack.c.l.b16 %v128
    %v168 = vunpack.c.l.b16 %v129
    %v169 = vunpack.c.l.b16 %v130
    %v170 = vunpack.c.l.b16 %v131
    %v171 = vpack.c.b16 %v156, %v155
    %v172 = vpack.c.b16 %v158, %v157
    %v173 = vpack.c.b16 %v160, %v159
    %v174 = vpack.c.b16 %v162, %v161
    %v175 = vpack.c.b16 %v164, %v163
    %v176 = vpack.c.b16 %v166, %v165
    %v177 = vpack.c.b16 %v168, %v167
    %v178 = vpack.c.b16 %v170, %v169
    %187 = vmatprep.subr.bf16.mxu0 0
    %188 = vmatpush1.bf16.msra.mxu0 %v171
    %189 = vmatprep.subr.bf16.mxu0 0
    %190 = vmatpush1.bf16.msra.mxu0 %v172
    %191 = vmatprep.subr.bf16.mxu0 0
    %192 = vmatpush1.bf16.msra.mxu0 %v173
    %193 = vmatprep.subr.bf16.mxu0 0
    %194 = vmatpush1.bf16.msra.mxu0 %v174
    %195 = vmatprep.subr.bf16.mxu0 0
    %196 = vmatpush1.bf16.msra.mxu0 %v175
    %197 = vmatprep.subr.bf16.mxu0 0
    %198 = vmatpush1.bf16.msra.mxu0 %v176
    %199 = vmatprep.subr.bf16.mxu0 0
    %200 = vmatpush1.bf16.msra.mxu0 %v177
    %201 = vmatprep.subr.bf16.mxu0 0
    %202 = vmatpush1.bf16.msra.mxu0 %v178
    %203 = vmatprep.subr.bf16.mxu0 0
    %204 = vmatpush1.bf16.msra.mxu0 0
    %205 = vmatprep.subr.bf16.mxu0 0
    %206 = vmatpush1.bf16.msra.mxu0 0
    %207 = vmatprep.subr.bf16.mxu0 0
    %208 = vmatpush1.bf16.msra.mxu0 0
    %209 = vmatprep.subr.bf16.mxu0 0
    %210 = vmatpush1.bf16.msra.mxu0 0
    %211 = vmatprep.subr.bf16.mxu0 0
    %212 = vmatpush1.bf16.msra.mxu0 0
    %213 = vmatprep.subr.bf16.mxu0 0
    %214 = vmatpush1.bf16.msra.mxu0 0
    %215 = vmatprep.subr.bf16.mxu0 0
    %216 = vmatpush1.bf16.msra.mxu0 0
    %217 = vmatprep.subr.bf16.mxu0 0
    %218 = vmatpush1.bf16.msra.mxu0 0
    %219 = vmatprep.mubr.bf16.mxu0 0
    %220 = vmatmul.mubr.bf16.gmra.mrb[0].mxu0 %v115
    %v221 = vpop.f32.mrb[0].mxu0
    %v222 = vadd.f32 %v137, %v221
    %v223 = vpop.f32.mrb[0].mxu0
    %v224 = vpop.f32.mrb[0].mxu0
    %v225 = vadd.f32 %v137, %v224
    %v226 = vpop.f32.mrb[0].mxu0
    %227 = vdwg.mxu0
    %228 = vst.msk [vmem:[#allocation2] sm:$0xff] %vm52, %v222
    %229 = vst.msk [vmem:[#allocation2 + $0x8] sm:$0xff] %vm52, %v225
    // Predicated region
    $region22: #{progen_mlp.1} parent=1 // pred_check
      _
    $region23: #{progen_mlp.1} parent=1 // pred_check_branch
      %231 = sbr.rel (0) target = $region25
    $region24: #{progen_mlp.1} parent=1 // pred_region
      %s233 = ssub.s32 256, 256
      %234 = vsyncadd [#allocation3], %s233
      %s235 = sshll.u32 [#allocation2], 4
      %s236 = int_to_ptr.vmem [resolvable:$true] %s235
      %241 = dma.vmem_to_hbm [thread:$0]  %s236, 256, %s5, [#allocation3], 128, 128, 8
    $region25: #{progen_mlp.1} parent=1 // pred_fallthru
      _
    // Predicated region
    $region26: #{progen_mlp.1} parent=1 // pred_check
      _
    $region27: #{progen_mlp.1} parent=1 // pred_check_branch
      %243 = sbr.rel (0) target = $region29
    $region28: #{progen_mlp.1} parent=1 // pred_region
      %244 = dma.done [#allocation3], 256
    $region29: #{progen_mlp.1} parent=1 // pred_fallthru
      _
    %245 = vsyncpa [#allocation3], 1

</llo_original>
